<compile_context>
chip_gen: v7x
topology: tpu7x:2x2x1
jax: 0.10.0
libtpu: 0.0.40
codegen_flags: <defaults>
</compile_context>

<pallas_src>
import functools

import jax
import jax.numpy as jnp
from jax.experimental import pallas as pl
from jax.experimental.pallas import tpu as pltpu

KH = KW = 5           # SRM kernel size
CIN = 3               # input channels
COUT = 30             # SRM filter count
COUT_PAD = 32         # out channels padded to a sublane multiple for the MXU
KKC = KH * KW * CIN   # im2col contraction depth = 75
PAD = 2               # conv padding


def _round_up(v, m):
    return (v + m - 1) // m * m


def _srm_conv_kernel(x_ref, w_ref, b_ref, m_ref, o_ref, sf_ref, p_ref,
                     *, H, W, TH, WIN, n_h, data_start):
    """Computes TH output rows of the conv for one batch element.

    x_ref : (1, CIN, H*W)     full image, flattened NCHW (spatial on lanes)
    w_ref : (COUT_PAD, KKC)   weights as (out, (kh, kw, cin)); rows 30..31 zero
    b_ref : (COUT_PAD, 1)     bias (zero padded)
    m_ref : (KW, TH*W)        per-kw width-boundary masks (0./1.)
    o_ref : (1, COUT, TH*W)   output tile: channels on sublanes, spatial on lanes
    sf_ref: (CIN, L)          scratch: zero-padded flattened image
    p_ref : (KKC, TH*W)       scratch: im2col patch matrix
    """
    HW = H * W
    THW = TH * W
    L = sf_ref.shape[1]
    shift = data_start - (PAD * W + PAD)

    # In-kernel zero padding: zero only the halo/guard bands, then copy the
    # image interior (the interior is fully overwritten every step, so the
    # kernel is stateless and safe under megacore grid sharding).
    sf_ref[:, 0:data_start] = jnp.zeros((CIN, data_start), jnp.float32)
    tail = L - (data_start + HW)
    if tail > 0:
        sf_ref[:, data_start + HW:L] = jnp.zeros((CIN, tail), jnp.float32)
    sf_ref[:, data_start:data_start + HW] = x_ref[0]

    # Lane-tile-aligned window of the padded flat image covering this tile's
    # receptive field (static when there is a single tile).
    if n_h == 1:
        base = 0
    else:
        base = pl.multiple_of(pl.program_id(1) * THW, 128)
    win = sf_ref[:, pl.ds(base, WIN)]                       # (CIN, WIN)

    # im2col: 25 lane-shifted views, masked at the left/right image border,
    # stacked into the (75, TH*W) patch matrix.
    for kh in range(KH):
        for kw in range(KW):
            t = kh * KW + kw
            off = kh * W + kw + shift
            tap = win[:, off:off + THW] * m_ref[kw:kw + 1, :]
            p_ref[t * CIN:(t + 1) * CIN, :] = tap

    # Single K=75 MXU matmul -> lane-dense (COUT, TH*W) output tile.
    res = jnp.dot(w_ref[...], p_ref[...], preferred_element_type=jnp.float32)
    res = res + b_ref[...]
    # TODO(synk): a bf16 output variant would halve the dominant store traffic
    # on v5e; kept f32 to match the PyTorch module's numerics.
    o_ref[0] = res[:COUT, :].astype(o_ref.dtype)


def high_pass_filter(x_nchw, weight_oihw, bias, *, tile_h=None):
    """Conv2d(3->30, k=5, s=1, p=2) forward. NCHW in, NCHW out (float32)."""
    N, C, H, W = x_nchw.shape
    assert C == CIN
    HW = H * W

    # ---- spatial tiling over output rows (bounds VMEM at large images) -----
    if tile_h is None:
        tile_h = H
        if HW > 32768:  # cap per-tile lanes: 30 x 32768 x 4B ~= 3.9 MiB out block
            for cand in range(H, 0, -1):
                if H % cand == 0 and cand * W <= 32768 and (cand * W) % 128 == 0:
                    tile_h = cand
                    break
        # TODO(synk): for images whose *full* flattened input block no longer
        # fits VMEM, the input itself needs H-tiling with halo DMA
        # (memory_space=pl.ANY + pltpu.make_async_copy); not needed here.
    TH = tile_h
    assert H % TH == 0
    n_h = H // TH
    THW = TH * W
    if n_h > 1:
        # Tiled path reads a lane-tile-aligned dynamic window of the scratch.
        assert THW % 128 == 0, "tile_h * W must be a multiple of 128 when tiling"

    # Scratch geometry: image interior placed at a 128-aligned offset, window
    # sized to cover the full 5x5 receptive field of one tile.
    data_start = _round_up(PAD * W + PAD, 128)
    shift = data_start - (PAD * W + PAD)
    WIN = _round_up(THW + (KH - 1) * W + (KW - 1) + shift, 128)
    L = _round_up(max((n_h - 1) * THW + WIN, data_start + HW), 128)

    # ---- layout plumbing (all free or tiny) ---------------------------------
    x_flat = x_nchw.reshape(N, CIN, HW)                     # free metadata reshape

    # OIHW -> (COUT, kh*kw*cin), out-channels padded 30 -> 32 for the MXU.
    wt = jnp.transpose(weight_oihw, (0, 2, 3, 1)).reshape(COUT, KKC)
    wt = jnp.pad(wt, ((0, COUT_PAD - COUT), (0, 0)))
    bz = jnp.pad(bias, (0, COUT_PAD - COUT)).reshape(COUT_PAD, 1)

    # Width-boundary validity masks, one per kw tap (depend only on lane % W).
    col = jnp.arange(THW, dtype=jnp.int32) % W
    mask = jnp.stack(
        [((col + kw >= PAD) & (col + kw < W + PAD)).astype(jnp.float32)
         for kw in range(KW)], axis=0)                      # (KW, TH*W)

    kernel = functools.partial(
        _srm_conv_kernel,
        H=H, W=W, TH=TH, WIN=WIN, n_h=n_h, data_start=data_start)

    out_flat = pl.pallas_call(
        kernel,
        out_shape=jax.ShapeDtypeStruct((N, COUT, HW), jnp.float32),
        grid_spec=pltpu.PrefetchScalarGridSpec(
            num_scalar_prefetch=0,
            grid=(N, n_h),
            in_specs=[
                pl.BlockSpec((1, CIN, HW), lambda n, i: (n, 0, 0)),
                pl.BlockSpec((COUT_PAD, KKC), lambda n, i: (0, 0)),
                pl.BlockSpec((COUT_PAD, 1), lambda n, i: (0, 0)),
                pl.BlockSpec((KW, THW), lambda n, i: (0, 0)),
            ],
            out_specs=pl.BlockSpec((1, COUT, THW), lambda n, i: (n, 0, i)),
            scratch_shapes=[
                pltpu.VMEM((CIN, L), jnp.float32),     # zero-padded flat image
                pltpu.VMEM((KKC, THW), jnp.float32),   # im2col patch matrix
            ],
        ),
        compiler_params=pltpu.CompilerParams(
            dimension_semantics=("parallel", "parallel"),
            vmem_limit_bytes=64 * 1024 * 1024,
        ),
    )(x_flat, wt, bz, mask)

    # (N, 30, H*W) -> (N, 30, H, W): output is already NCHW, reshape is free.
    return out_flat.reshape(N, COUT, H, W)


def make_params(key):
    """Deterministic synthetic SRM filter bank + Conv2d-default bias.

    SRM_Kernels.npy (30, 1, 5, 5) is not available in-script, so the base bank
    is synthesized; the module's `filter.repeat(1, 3, 1, 1)` is reproduced.
    """
    k_w, k_b = jax.random.split(key)
    srm_base = jax.random.normal(k_w, (COUT, 1, KH, KW), dtype=jnp.float32)
    weight = jnp.tile(srm_base, (1, CIN, 1, 1))             # (30, 3, 5, 5)
    bound = 1.0 / jnp.sqrt(jnp.float32(CIN * KH * KW))      # Conv2d default bias init
    bias = jax.random.uniform(k_b, (COUT,), dtype=jnp.float32,
                              minval=-bound, maxval=bound)
    return weight, bias


if __name__ == "__main__":
    key = jax.random.PRNGKey(0)
    k_x, k_p = jax.random.split(key)

    x = jax.random.normal(k_x, (2, CIN, 16, 16), dtype=jnp.float32)
    weight, bias = make_params(k_p)

    # tile_h=8 exercises the spatially tiled path (grid=(2, 2), TH*W = 128).
    out = high_pass_filter(x, weight, bias, tile_h=8)
    jax.block_until_ready(out)
    assert out.shape == (2, COUT, 16, 16), out.shape

    # Cross-check vs XLA's conv (tolerance covers MXU bf16-pass rounding).
    ref = jax.lax.conv_general_dilated(
        x, weight, window_strides=(1, 1),
        padding=((PAD, PAD), (PAD, PAD)),
        dimension_numbers=("NCHW", "OIHW", "NCHW"),
    ) + bias.reshape(1, COUT, 1, 1)
    err = float(jnp.max(jnp.abs(out - ref)))
    assert err < 0.5, f"max abs error vs reference conv: {err}"

    print("KERNEL_OK")
</pallas_src>

<mosaic_0001>
module attributes {stable_mosaic.version = 11 : i64} {
  func.func @_srm_conv_kernel(%arg0: i32, %arg1: i32, %arg2: memref<1x3x256xf32, #tpu.memory_space<vmem>>, %arg3: memref<32x75xf32, #tpu.memory_space<vmem>>, %arg4: memref<32x1xf32, #tpu.memory_space<vmem>>, %arg5: memref<5x128xf32, #tpu.memory_space<vmem>>, %arg6: memref<1x30x128xf32, #tpu.memory_space<vmem>>, %arg7: memref<3x512xf32, #tpu.memory_space<vmem>>, %arg8: memref<75x128xf32, #tpu.memory_space<vmem>>) attributes {dimension_semantics = [#tpu.dimension_semantics<parallel>, #tpu.dimension_semantics<parallel>], iteration_bounds = array<i64: 2, 2>, scalar_prefetch = 0 : i64, scratch_operands = 2 : i64, tpu.core_type = #tpu.core_type<tc>, window_params = [{transform_indices = @transform_0, window_bounds = array<i64: 1, 3, 256>}, {pipeline_mode = #tpu.pipeline_mode<synchronous>, transform_indices = @transform_1, window_bounds = array<i64: 32, 75>}, {pipeline_mode = #tpu.pipeline_mode<synchronous>, transform_indices = @transform_2, window_bounds = array<i64: 32, 1>}, {pipeline_mode = #tpu.pipeline_mode<synchronous>, transform_indices = @transform_3, window_bounds = array<i64: 5, 128>}, {transform_indices = @transform_4, window_bounds = array<i64: 1, 30, 128>}]} {
    %cst = arith.constant 0.000000e+00 : f32
    %0 = vector.broadcast %cst : f32 to vector<3x128xf32>
    %c0 = arith.constant 0 : index
    %c0_0 = arith.constant 0 : index
    %1 = vector.load %arg7[%c0, %c0_0] : memref<3x512xf32, #tpu.memory_space<vmem>>, vector<3x128xf32>
    tpu.vector_store %arg7[%c0, %c0_0], %0 {strides = array<i32>} : memref<3x512xf32, #tpu.memory_space<vmem>>, vector<3x128xf32>,
    %cst_1 = arith.constant 0.000000e+00 : f32
    %2 = vector.broadcast %cst_1 : f32 to vector<3x128xf32>
    %c0_2 = arith.constant 0 : index
    %c384 = arith.constant 384 : index
    %3 = vector.load %arg7[%c0_2, %c384] : memref<3x512xf32, #tpu.memory_space<vmem>>, vector<3x128xf32>
    tpu.vector_store %arg7[%c0_2, %c384], %2 {strides = array<i32>} : memref<3x512xf32, #tpu.memory_space<vmem>>, vector<3x128xf32>,
    %c0_3 = arith.constant 0 : index
    %c0_4 = arith.constant 0 : index
    %c0_5 = arith.constant 0 : index
    %4 = vector.load %arg2[%c0_3, %c0_4, %c0_5] : memref<1x3x256xf32, #tpu.memory_space<vmem>>, vector<1x3x256xf32>
    %5 = vector.shape_cast %4 : vector<1x3x256xf32> to vector<3x256xf32>
    %c0_6 = arith.constant 0 : index
    %c128 = arith.constant 128 : index
    %6 = vector.load %arg7[%c0_6, %c128] : memref<3x512xf32, #tpu.memory_space<vmem>>, vector<3x256xf32>
    tpu.vector_store %arg7[%c0_6, %c128], %5 {strides = array<i32>} : memref<3x512xf32, #tpu.memory_space<vmem>>, vector<3x256xf32>,
    %c128_i32 = arith.constant 128 : i32
    %7 = arith.muli %arg1, %c128_i32 : i32
    %8 = tpu.assume_multiple %7, 128 : i32
    %c0_7 = arith.constant 0 : index
    %9 = arith.index_cast %8 : i32 to index
    %10 = vector.load %arg7[%c0_7, %9] : memref<3x512xf32, #tpu.memory_space<vmem>>, vector<3x384xf32>
    %11 = vector.extract_strided_slice %10 {offsets = [0, 94], sizes = [3, 128], strides = [1, 1]} : vector<3x384xf32> to vector<3x128xf32>
    %c0_8 = arith.constant 0 : index
    %c0_9 = arith.constant 0 : index
    %12 = vector.load %arg5[%c0_8, %c0_9] : memref<5x128xf32, #tpu.memory_space<vmem>>, vector<1x128xf32>
    %13 = vector.broadcast %12 : vector<1x128xf32> to vector<3x128xf32>
    %14 = arith.mulf %11, %13 : vector<3x128xf32>
    %c0_10 = arith.constant 0 : index
    %c0_11 = arith.constant 0 : index
    %15 = vector.load %arg8[%c0_10, %c0_11] : memref<75x128xf32, #tpu.memory_space<vmem>>, vector<3x128xf32>
    tpu.vector_store %arg8[%c0_10, %c0_11], %14 {strides = array<i32>} : memref<75x128xf32, #tpu.memory_space<vmem>>, vector<3x128xf32>,
    %16 = vector.extract_strided_slice %10 {offsets = [0, 95], sizes = [3, 128], strides = [1, 1]} : vector<3x384xf32> to vector<3x128xf32>
    %c1 = arith.constant 1 : index
    %c0_12 = arith.constant 0 : index
    %17 = vector.load %arg5[%c1, %c0_12] : memref<5x128xf32, #tpu.memory_space<vmem>>, vector<1x128xf32>
    %18 = vector.broadcast %17 : vector<1x128xf32> to vector<3x128xf32>
    %19 = arith.mulf %16, %18 : vector<3x128xf32>
    %c3 = arith.constant 3 : index
    %c0_13 = arith.constant 0 : index
    %20 = vector.load %arg8[%c3, %c0_13] : memref<75x128xf32, #tpu.memory_space<vmem>>, vector<3x128xf32>
    tpu.vector_store %arg8[%c3, %c0_13], %19 {strides = array<i32>} : memref<75x128xf32, #tpu.memory_space<vmem>>, vector<3x128xf32>,
    %21 = vector.extract_strided_slice %10 {offsets = [0, 96], sizes = [3, 128], strides = [1, 1]} : vector<3x384xf32> to vector<3x128xf32>
    %c2 = arith.constant 2 : index
    %c0_14 = arith.constant 0 : index
    %22 = vector.load %arg5[%c2, %c0_14] : memref<5x128xf32, #tpu.memory_space<vmem>>, vector<1x128xf32>
    %23 = vector.broadcast %22 : vector<1x128xf32> to vector<3x128xf32>
    %24 = arith.mulf %21, %23 : vector<3x128xf32>
    %c6 = arith.constant 6 : index
    %c0_15 = arith.constant 0 : index
    %25 = vector.load %arg8[%c6, %c0_15] : memref<75x128xf32, #tpu.memory_space<vmem>>, vector<3x128xf32>
    tpu.vector_store %arg8[%c6, %c0_15], %24 {strides = array<i32>} : memref<75x128xf32, #tpu.memory_space<vmem>>, vector<3x128xf32>,
    %26 = vector.extract_strided_slice %10 {offsets = [0, 97], sizes = [3, 128], strides = [1, 1]} : vector<3x384xf32> to vector<3x128xf32>
    %c3_16 = arith.constant 3 : index
    %c0_17 = arith.constant 0 : index
    %27 = vector.load %arg5[%c3_16, %c0_17] : memref<5x128xf32, #tpu.memory_space<vmem>>, vector<1x128xf32>
    %28 = vector.broadcast %27 : vector<1x128xf32> to vector<3x128xf32>
    %29 = arith.mulf %26, %28 : vector<3x128xf32>
    %c9 = arith.constant 9 : index
    %c0_18 = arith.constant 0 : index
    %30 = vector.load %arg8[%c9, %c0_18] : memref<75x128xf32, #tpu.memory_space<vmem>>, vector<3x128xf32>
    tpu.vector_store %arg8[%c9, %c0_18], %29 {strides = array<i32>} : memref<75x128xf32, #tpu.memory_space<vmem>>, vector<3x128xf32>,
    %31 = vector.extract_strided_slice %10 {offsets = [0, 98], sizes = [3, 128], strides = [1, 1]} : vector<3x384xf32> to vector<3x128xf32>
    %c4 = arith.constant 4 : index
    %c0_19 = arith.constant 0 : index
    %32 = vector.load %arg5[%c4, %c0_19] : memref<5x128xf32, #tpu.memory_space<vmem>>, vector<1x128xf32>
    %33 = vector.broadcast %32 : vector<1x128xf32> to vector<3x128xf32>
    %34 = arith.mulf %31, %33 : vector<3x128xf32>
    %c12 = arith.constant 12 : index
    %c0_20 = arith.constant 0 : index
    %35 = vector.load %arg8[%c12, %c0_20] : memref<75x128xf32, #tpu.memory_space<vmem>>, vector<3x128xf32>
    tpu.vector_store %arg8[%c12, %c0_20], %34 {strides = array<i32>} : memref<75x128xf32, #tpu.memory_space<vmem>>, vector<3x128xf32>,
    %36 = vector.extract_strided_slice %10 {offsets = [0, 110], sizes = [3, 128], strides = [1, 1]} : vector<3x384xf32> to vector<3x128xf32>
    %c0_21 = arith.constant 0 : index
    %c0_22 = arith.constant 0 : index
    %37 = vector.load %arg5[%c0_21, %c0_22] : memref<5x128xf32, #tpu.memory_space<vmem>>, vector<1x128xf32>
    %38 = vector.broadcast %37 : vector<1x128xf32> to vector<3x128xf32>
    %39 = arith.mulf %36, %38 : vector<3x128xf32>
    %c15 = arith.constant 15 : index
    %c0_23 = arith.constant 0 : index
    %40 = vector.load %arg8[%c15, %c0_23] : memref<75x128xf32, #tpu.memory_space<vmem>>, vector<3x128xf32>
    tpu.vector_store %arg8[%c15, %c0_23], %39 {strides = array<i32>} : memref<75x128xf32, #tpu.memory_space<vmem>>, vector<3x128xf32>,
    %41 = vector.extract_strided_slice %10 {offsets = [0, 111], sizes = [3, 128], strides = [1, 1]} : vector<3x384xf32> to vector<3x128xf32>
    %c1_24 = arith.constant 1 : index
    %c0_25 = arith.constant 0 : index
    %42 = vector.load %arg5[%c1_24, %c0_25] : memref<5x128xf32, #tpu.memory_space<vmem>>, vector<1x128xf32>
    %43 = vector.broadcast %42 : vector<1x128xf32> to vector<3x128xf32>
    %44 = arith.mulf %41, %43 : vector<3x128xf32>
    %c18 = arith.constant 18 : index
    %c0_26 = arith.constant 0 : index
    %45 = vector.load %arg8[%c18, %c0_26] : memref<75x128xf32, #tpu.memory_space<vmem>>, vector<3x128xf32>
    tpu.vector_store %arg8[%c18, %c0_26], %44 {strides = array<i32>} : memref<75x128xf32, #tpu.memory_space<vmem>>, vector<3x128xf32>,
    %46 = vector.extract_strided_slice %10 {offsets = [0, 112], sizes = [3, 128], strides = [1, 1]} : vector<3x384xf32> to vector<3x128xf32>
    %c2_27 = arith.constant 2 : index
    %c0_28 = arith.constant 0 : index
    %47 = vector.load %arg5[%c2_27, %c0_28] : memref<5x128xf32, #tpu.memory_space<vmem>>, vector<1x128xf32>
    %48 = vector.broadcast %47 : vector<1x128xf32> to vector<3x128xf32>
    %49 = arith.mulf %46, %48 : vector<3x128xf32>
    %c21 = arith.constant 21 : index
    %c0_29 = arith.constant 0 : index
    %50 = vector.load %arg8[%c21, %c0_29] : memref<75x128xf32, #tpu.memory_space<vmem>>, vector<3x128xf32>
    tpu.vector_store %arg8[%c21, %c0_29], %49 {strides = array<i32>} : memref<75x128xf32, #tpu.memory_space<vmem>>, vector<3x128xf32>,
    %51 = vector.extract_strided_slice %10 {offsets = [0, 113], sizes = [3, 128], strides = [1, 1]} : vector<3x384xf32> to vector<3x128xf32>
    %c3_30 = arith.constant 3 : index
    %c0_31 = arith.constant 0 : index
    %52 = vector.load %arg5[%c3_30, %c0_31] : memref<5x128xf32, #tpu.memory_space<vmem>>, vector<1x128xf32>
    %53 = vector.broadcast %52 : vector<1x128xf32> to vector<3x128xf32>
    %54 = arith.mulf %51, %53 : vector<3x128xf32>
    %c24 = arith.constant 24 : index
    %c0_32 = arith.constant 0 : index
    %55 = vector.load %arg8[%c24, %c0_32] : memref<75x128xf32, #tpu.memory_space<vmem>>, vector<3x128xf32>
    tpu.vector_store %arg8[%c24, %c0_32], %54 {strides = array<i32>} : memref<75x128xf32, #tpu.memory_space<vmem>>, vector<3x128xf32>,
    %56 = vector.extract_strided_slice %10 {offsets = [0, 114], sizes = [3, 128], strides = [1, 1]} : vector<3x384xf32> to vector<3x128xf32>
    %c4_33 = arith.constant 4 : index
    %c0_34 = arith.constant 0 : index
    %57 = vector.load %arg5[%c4_33, %c0_34] : memref<5x128xf32, #tpu.memory_space<vmem>>, vector<1x128xf32>
    %58 = vector.broadcast %57 : vector<1x128xf32> to vector<3x128xf32>
    %59 = arith.mulf %56, %58 : vector<3x128xf32>
    %c27 = arith.constant 27 : index
    %c0_35 = arith.constant 0 : index
    %60 = vector.load %arg8[%c27, %c0_35] : memref<75x128xf32, #tpu.memory_space<vmem>>, vector<3x128xf32>
    tpu.vector_store %arg8[%c27, %c0_35], %59 {strides = array<i32>} : memref<75x128xf32, #tpu.memory_space<vmem>>, vector<3x128xf32>,
    %61 = vector.extract_strided_slice %10 {offsets = [0, 126], sizes = [3, 128], strides = [1, 1]} : vector<3x384xf32> to vector<3x128xf32>
    %c0_36 = arith.constant 0 : index
    %c0_37 = arith.constant 0 : index
    %62 = vector.load %arg5[%c0_36, %c0_37] : memref<5x128xf32, #tpu.memory_space<vmem>>, vector<1x128xf32>
    %63 = vector.broadcast %62 : vector<1x128xf32> to vector<3x128xf32>
    %64 = arith.mulf %61, %63 : vector<3x128xf32>
    %c30 = arith.constant 30 : index
    %c0_38 = arith.constant 0 : index
    %65 = vector.load %arg8[%c30, %c0_38] : memref<75x128xf32, #tpu.memory_space<vmem>>, vector<3x128xf32>
    tpu.vector_store %arg8[%c30, %c0_38], %64 {strides = array<i32>} : memref<75x128xf32, #tpu.memory_space<vmem>>, vector<3x128xf32>,
    %66 = vector.extract_strided_slice %10 {offsets = [0, 127], sizes = [3, 128], strides = [1, 1]} : vector<3x384xf32> to vector<3x128xf32>
    %c1_39 = arith.constant 1 : index
    %c0_40 = arith.constant 0 : index
    %67 = vector.load %arg5[%c1_39, %c0_40] : memref<5x128xf32, #tpu.memory_space<vmem>>, vector<1x128xf32>
    %68 = vector.broadcast %67 : vector<1x128xf32> to vector<3x128xf32>
    %69 = arith.mulf %66, %68 : vector<3x128xf32>
    %c33 = arith.constant 33 : index
    %c0_41 = arith.constant 0 : index
    %70 = vector.load %arg8[%c33, %c0_41] : memref<75x128xf32, #tpu.memory_space<vmem>>, vector<3x128xf32>
    tpu.vector_store %arg8[%c33, %c0_41], %69 {strides = array<i32>} : memref<75x128xf32, #tpu.memory_space<vmem>>, vector<3x128xf32>,
    %71 = vector.extract_strided_slice %10 {offsets = [0, 128], sizes = [3, 128], strides = [1, 1]} : vector<3x384xf32> to vector<3x128xf32>
    %c2_42 = arith.constant 2 : index
    %c0_43 = arith.constant 0 : index
    %72 = vector.load %arg5[%c2_42, %c0_43] : memref<5x128xf32, #tpu.memory_space<vmem>>, vector<1x128xf32>
    %73 = vector.broadcast %72 : vector<1x128xf32> to vector<3x128xf32>
    %74 = arith.mulf %71, %73 : vector<3x128xf32>
    %c36 = arith.constant 36 : index
    %c0_44 = arith.constant 0 : index
    %75 = vector.load %arg8[%c36, %c0_44] : memref<75x128xf32, #tpu.memory_space<vmem>>, vector<3x128xf32>
    tpu.vector_store %arg8[%c36, %c0_44], %74 {strides = array<i32>} : memref<75x128xf32, #tpu.memory_space<vmem>>, vector<3x128xf32>,
    %76 = vector.extract_strided_slice %10 {offsets = [0, 129], sizes = [3, 128], strides = [1, 1]} : vector<3x384xf32> to vector<3x128xf32>
    %c3_45 = arith.constant 3 : index
    %c0_46 = arith.constant 0 : index
    %77 = vector.load %arg5[%c3_45, %c0_46] : memref<5x128xf32, #tpu.memory_space<vmem>>, vector<1x128xf32>
    %78 = vector.broadcast %77 : vector<1x128xf32> to vector<3x128xf32>
    %79 = arith.mulf %76, %78 : vector<3x128xf32>
    %c39 = arith.constant 39 : index
    %c0_47 = arith.constant 0 : index
    %80 = vector.load %arg8[%c39, %c0_47] : memref<75x128xf32, #tpu.memory_space<vmem>>, vector<3x128xf32>
    tpu.vector_store %arg8[%c39, %c0_47], %79 {strides = array<i32>} : memref<75x128xf32, #tpu.memory_space<vmem>>, vector<3x128xf32>,
    %81 = vector.extract_strided_slice %10 {offsets = [0, 130], sizes = [3, 128], strides = [1, 1]} : vector<3x384xf32> to vector<3x128xf32>
    %c4_48 = arith.constant 4 : index
    %c0_49 = arith.constant 0 : index
    %82 = vector.load %arg5[%c4_48, %c0_49] : memref<5x128xf32, #tpu.memory_space<vmem>>, vector<1x128xf32>
    %83 = vector.broadcast %82 : vector<1x128xf32> to vector<3x128xf32>
    %84 = arith.mulf %81, %83 : vector<3x128xf32>
    %c42 = arith.constant 42 : index
    %c0_50 = arith.constant 0 : index
    %85 = vector.load %arg8[%c42, %c0_50] : memref<75x128xf32, #tpu.memory_space<vmem>>, vector<3x128xf32>
    tpu.vector_store %arg8[%c42, %c0_50], %84 {strides = array<i32>} : memref<75x128xf32, #tpu.memory_space<vmem>>, vector<3x128xf32>,
    %86 = vector.extract_strided_slice %10 {offsets = [0, 142], sizes = [3, 128], strides = [1, 1]} : vector<3x384xf32> to vector<3x128xf32>
    %c0_51 = arith.constant 0 : index
    %c0_52 = arith.constant 0 : index
    %87 = vector.load %arg5[%c0_51, %c0_52] : memref<5x128xf32, #tpu.memory_space<vmem>>, vector<1x128xf32>
    %88 = vector.broadcast %87 : vector<1x128xf32> to vector<3x128xf32>
    %89 = arith.mulf %86, %88 : vector<3x128xf32>
    %c45 = arith.constant 45 : index
    %c0_53 = arith.constant 0 : index
    %90 = vector.load %arg8[%c45, %c0_53] : memref<75x128xf32, #tpu.memory_space<vmem>>, vector<3x128xf32>
    tpu.vector_store %arg8[%c45, %c0_53], %89 {strides = array<i32>} : memref<75x128xf32, #tpu.memory_space<vmem>>, vector<3x128xf32>,
    %91 = vector.extract_strided_slice %10 {offsets = [0, 143], sizes = [3, 128], strides = [1, 1]} : vector<3x384xf32> to vector<3x128xf32>
    %c1_54 = arith.constant 1 : index
    %c0_55 = arith.constant 0 : index
    %92 = vector.load %arg5[%c1_54, %c0_55] : memref<5x128xf32, #tpu.memory_space<vmem>>, vector<1x128xf32>
    %93 = vector.broadcast %92 : vector<1x128xf32> to vector<3x128xf32>
    %94 = arith.mulf %91, %93 : vector<3x128xf32>
    %c48 = arith.constant 48 : index
    %c0_56 = arith.constant 0 : index
    %95 = vector.load %arg8[%c48, %c0_56] : memref<75x128xf32, #tpu.memory_space<vmem>>, vector<3x128xf32>
    tpu.vector_store %arg8[%c48, %c0_56], %94 {strides = array<i32>} : memref<75x128xf32, #tpu.memory_space<vmem>>, vector<3x128xf32>,
    %96 = vector.extract_strided_slice %10 {offsets = [0, 144], sizes = [3, 128], strides = [1, 1]} : vector<3x384xf32> to vector<3x128xf32>
    %c2_57 = arith.constant 2 : index
    %c0_58 = arith.constant 0 : index
    %97 = vector.load %arg5[%c2_57, %c0_58] : memref<5x128xf32, #tpu.memory_space<vmem>>, vector<1x128xf32>
    %98 = vector.broadcast %97 : vector<1x128xf32> to vector<3x128xf32>
    %99 = arith.mulf %96, %98 : vector<3x128xf32>
    %c51 = arith.constant 51 : index
    %c0_59 = arith.constant 0 : index
    %100 = vector.load %arg8[%c51, %c0_59] : memref<75x128xf32, #tpu.memory_space<vmem>>, vector<3x128xf32>
    tpu.vector_store %arg8[%c51, %c0_59], %99 {strides = array<i32>} : memref<75x128xf32, #tpu.memory_space<vmem>>, vector<3x128xf32>,
    %101 = vector.extract_strided_slice %10 {offsets = [0, 145], sizes = [3, 128], strides = [1, 1]} : vector<3x384xf32> to vector<3x128xf32>
    %c3_60 = arith.constant 3 : index
    %c0_61 = arith.constant 0 : index
    %102 = vector.load %arg5[%c3_60, %c0_61] : memref<5x128xf32, #tpu.memory_space<vmem>>, vector<1x128xf32>
    %103 = vector.broadcast %102 : vector<1x128xf32> to vector<3x128xf32>
    %104 = arith.mulf %101, %103 : vector<3x128xf32>
    %c54 = arith.constant 54 : index
    %c0_62 = arith.constant 0 : index
    %105 = vector.load %arg8[%c54, %c0_62] : memref<75x128xf32, #tpu.memory_space<vmem>>, vector<3x128xf32>
    tpu.vector_store %arg8[%c54, %c0_62], %104 {strides = array<i32>} : memref<75x128xf32, #tpu.memory_space<vmem>>, vector<3x128xf32>,
    %106 = vector.extract_strided_slice %10 {offsets = [0, 146], sizes = [3, 128], strides = [1, 1]} : vector<3x384xf32> to vector<3x128xf32>
    %c4_63 = arith.constant 4 : index
    %c0_64 = arith.constant 0 : index
    %107 = vector.load %arg5[%c4_63, %c0_64] : memref<5x128xf32, #tpu.memory_space<vmem>>, vector<1x128xf32>
    %108 = vector.broadcast %107 : vector<1x128xf32> to vector<3x128xf32>
    %109 = arith.mulf %106, %108 : vector<3x128xf32>
    %c57 = arith.constant 57 : index
    %c0_65 = arith.constant 0 : index
    %110 = vector.load %arg8[%c57, %c0_65] : memref<75x128xf32, #tpu.memory_space<vmem>>, vector<3x128xf32>
    tpu.vector_store %arg8[%c57, %c0_65], %109 {strides = array<i32>} : memref<75x128xf32, #tpu.memory_space<vmem>>, vector<3x128xf32>,
    %111 = vector.extract_strided_slice %10 {offsets = [0, 158], sizes = [3, 128], strides = [1, 1]} : vector<3x384xf32> to vector<3x128xf32>
    %c0_66 = arith.constant 0 : index
    %c0_67 = arith.constant 0 : index
    %112 = vector.load %arg5[%c0_66, %c0_67] : memref<5x128xf32, #tpu.memory_space<vmem>>, vector<1x128xf32>
    %113 = vector.broadcast %112 : vector<1x128xf32> to vector<3x128xf32>
    %114 = arith.mulf %111, %113 : vector<3x128xf32>
    %c60 = arith.constant 60 : index
    %c0_68 = arith.constant 0 : index
    %115 = vector.load %arg8[%c60, %c0_68] : memref<75x128xf32, #tpu.memory_space<vmem>>, vector<3x128xf32>
    tpu.vector_store %arg8[%c60, %c0_68], %114 {strides = array<i32>} : memref<75x128xf32, #tpu.memory_space<vmem>>, vector<3x128xf32>,
    %116 = vector.extract_strided_slice %10 {offsets = [0, 159], sizes = [3, 128], strides = [1, 1]} : vector<3x384xf32> to vector<3x128xf32>
    %c1_69 = arith.constant 1 : index
    %c0_70 = arith.constant 0 : index
    %117 = vector.load %arg5[%c1_69, %c0_70] : memref<5x128xf32, #tpu.memory_space<vmem>>, vector<1x128xf32>
    %118 = vector.broadcast %117 : vector<1x128xf32> to vector<3x128xf32>
    %119 = arith.mulf %116, %118 : vector<3x128xf32>
    %c63 = arith.constant 63 : index
    %c0_71 = arith.constant 0 : index
    %120 = vector.load %arg8[%c63, %c0_71] : memref<75x128xf32, #tpu.memory_space<vmem>>, vector<3x128xf32>
    tpu.vector_store %arg8[%c63, %c0_71], %119 {strides = array<i32>} : memref<75x128xf32, #tpu.memory_space<vmem>>, vector<3x128xf32>,
    %121 = vector.extract_strided_slice %10 {offsets = [0, 160], sizes = [3, 128], strides = [1, 1]} : vector<3x384xf32> to vector<3x128xf32>
    %c2_72 = arith.constant 2 : index
    %c0_73 = arith.constant 0 : index
    %122 = vector.load %arg5[%c2_72, %c0_73] : memref<5x128xf32, #tpu.memory_space<vmem>>, vector<1x128xf32>
    %123 = vector.broadcast %122 : vector<1x128xf32> to vector<3x128xf32>
    %124 = arith.mulf %121, %123 : vector<3x128xf32>
    %c66 = arith.constant 66 : index
    %c0_74 = arith.constant 0 : index
    %125 = vector.load %arg8[%c66, %c0_74] : memref<75x128xf32, #tpu.memory_space<vmem>>, vector<3x128xf32>
    tpu.vector_store %arg8[%c66, %c0_74], %124 {strides = array<i32>} : memref<75x128xf32, #tpu.memory_space<vmem>>, vector<3x128xf32>,
    %126 = vector.extract_strided_slice %10 {offsets = [0, 161], sizes = [3, 128], strides = [1, 1]} : vector<3x384xf32> to vector<3x128xf32>
    %c3_75 = arith.constant 3 : index
    %c0_76 = arith.constant 0 : index
    %127 = vector.load %arg5[%c3_75, %c0_76] : memref<5x128xf32, #tpu.memory_space<vmem>>, vector<1x128xf32>
    %128 = vector.broadcast %127 : vector<1x128xf32> to vector<3x128xf32>
    %129 = arith.mulf %126, %128 : vector<3x128xf32>
    %c69 = arith.constant 69 : index
    %c0_77 = arith.constant 0 : index
    %130 = vector.load %arg8[%c69, %c0_77] : memref<75x128xf32, #tpu.memory_space<vmem>>, vector<3x128xf32>
    tpu.vector_store %arg8[%c69, %c0_77], %129 {strides = array<i32>} : memref<75x128xf32, #tpu.memory_space<vmem>>, vector<3x128xf32>,
    %131 = vector.extract_strided_slice %10 {offsets = [0, 162], sizes = [3, 128], strides = [1, 1]} : vector<3x384xf32> to vector<3x128xf32>
    %c4_78 = arith.constant 4 : index
    %c0_79 = arith.constant 0 : index
    %132 = vector.load %arg5[%c4_78, %c0_79] : memref<5x128xf32, #tpu.memory_space<vmem>>, vector<1x128xf32>
    %133 = vector.broadcast %132 : vector<1x128xf32> to vector<3x128xf32>
    %134 = arith.mulf %131, %133 : vector<3x128xf32>
    %c72 = arith.constant 72 : index
    %c0_80 = arith.constant 0 : index
    %135 = vector.load %arg8[%c72, %c0_80] : memref<75x128xf32, #tpu.memory_space<vmem>>, vector<3x128xf32>
    tpu.vector_store %arg8[%c72, %c0_80], %134 {strides = array<i32>} : memref<75x128xf32, #tpu.memory_space<vmem>>, vector<3x128xf32>,
    %c0_81 = arith.constant 0 : index
    %c0_82 = arith.constant 0 : index
    %136 = vector.load %arg3[%c0_81, %c0_82] : memref<32x75xf32, #tpu.memory_space<vmem>>, vector<32x75xf32>
    %c0_83 = arith.constant 0 : index
    %c0_84 = arith.constant 0 : index
    %137 = vector.load %arg8[%c0_83, %c0_84] : memref<75x128xf32, #tpu.memory_space<vmem>>, vector<75x128xf32>
    %cst_85 = arith.constant dense<0.000000e+00> : vector<32x128xf32>
    %138 = tpu.matmul %136, %137, %cst_85 {dimension_numbers = #tpu.dot_dimension_numbers<[1], [0], [0], [1], [0, 0, 1, 1], [], []>} : vector<32x75xf32>, vector<75x128xf32>, vector<32x128xf32> -> vector<32x128xf32>
    %c0_86 = arith.constant 0 : index
    %c0_87 = arith.constant 0 : index
    %139 = vector.load %arg4[%c0_86, %c0_87] : memref<32x1xf32, #tpu.memory_space<vmem>>, vector<32x1xf32>
    %140 = vector.broadcast %139 : vector<32x1xf32> to vector<32x128xf32>
    %141 = arith.addf %138, %140 : vector<32x128xf32>
    %142 = vector.extract_strided_slice %141 {offsets = [0, 0], sizes = [30, 128], strides = [1, 1]} : vector<32x128xf32> to vector<30x128xf32>
    %c0_88 = arith.constant 0 : index
    %c0_89 = arith.constant 0 : index
    %c0_90 = arith.constant 0 : index
    %143 = vector.load %arg6[%c0_88, %c0_89, %c0_90] : memref<1x30x128xf32, #tpu.memory_space<vmem>>, vector<1x30x128xf32>
    %144 = vector.shape_cast %143 : vector<1x30x128xf32> to vector<30x128xf32>
    %145 = vector.shape_cast %142 : vector<30x128xf32> to vector<1x30x128xf32>
    tpu.vector_store %arg6[%c0_88, %c0_89, %c0_90], %145 {strides = array<i32>} : memref<1x30x128xf32, #tpu.memory_space<vmem>>, vector<1x30x128xf32>,
    return
  }
  func.func @transform_0(%arg0: i32, %arg1: i32) -> (i32, i32, i32) {
    %c0_i32 = arith.constant 0 : i32
    %c0_i32_0 = arith.constant 0 : i32
    %c0_i32_1 = arith.constant 0 : i32
    return %arg0, %c0_i32, %c0_i32_0 : i32, i32, i32
  }
  func.func @transform_1(%arg0: i32, %arg1: i32) -> (i32, i32) {
    %c0_i32 = arith.constant 0 : i32
    %c0_i32_0 = arith.constant 0 : i32
    %c0_i32_1 = arith.constant 0 : i32
    return %c0_i32, %c0_i32_0 : i32, i32
  }
  func.func @transform_2(%arg0: i32, %arg1: i32) -> (i32, i32) {
    %c0_i32 = arith.constant 0 : i32
    %c0_i32_0 = arith.constant 0 : i32
    %c0_i32_1 = arith.constant 0 : i32
    return %c0_i32, %c0_i32_0 : i32, i32
  }
  func.func @transform_3(%arg0: i32, %arg1: i32) -> (i32, i32) {
    %c0_i32 = arith.constant 0 : i32
    %c0_i32_0 = arith.constant 0 : i32
    %c0_i32_1 = arith.constant 0 : i32
    return %c0_i32, %c0_i32_0 : i32, i32
  }
  func.func @transform_4(%arg0: i32, %arg1: i32) -> (i32, i32, i32) {
    %c0_i32 = arith.constant 0 : i32
    %c0_i32_0 = arith.constant 0 : i32
    return %arg0, %c0_i32, %arg1 : i32, i32, i32
  }
}

</mosaic_0001>

<llo_original>
// kernel: tpu_custom_call.1
$region0: #{tpu_custom_call.1}
  #allocation0 [shape = 'u32[]', space=smem, size = 0x4, offset = 0x4, fixed_abs, tag = 'smem constant byte address 0x4 - core index']
  #allocation1 [shape = 'u32[144,128]{1,0:T(1,128)}', space=vmem, size = 0x12000, scoped, tag = 'internal scratch']
  #allocation2 [shape = 'f32[3,512]{1,0:T(4,128)}', space=vmem, size = 0x2000, scoped, tag = 'scratch operand']
  #allocation3 [shape = 'f32[75,128]{1,0:T(8,128)}', space=vmem, size = 0xa000, scoped, tag = 'scratch operand']
  %s0 = inlined_call_operand.hbm [shape: f32[2,3,256], index: 0, kind: input, shape index: {}]
  %s1 = inlined_call_operand.hbm [shape: f32[32,75], index: 1, kind: input, shape index: {}]
  %s2 = inlined_call_operand.hbm [shape: f32[32,1], index: 2, kind: input, shape index: {}]
  %s3 = inlined_call_operand.hbm [shape: f32[5,128], index: 3, kind: input, shape index: {}]
  %s4 = inlined_call_operand.hbm [shape: f32[2,30,256], index: 4, kind: output, shape index: {}]
  %s5 = sld [smem:[#allocation0]]
  $region65: #{tpu_custom_call.1} parent=0
    _
  %s7 = ssub.s32 1, %s5
  %s8 = scalar_select 0, %s7, %s5
  $region1: #{tpu_custom_call.1} parent=0
    #allocation4 [shape = 'u8[8192]{0}', space=vmem, size = 0x2000, scoped, tag = 'input window, operand 0']
    #allocation5 [shape = 's32[2]{0}', space=sflag, size = 0x8, scoped, tag = 'scoped memory for tpu_custom_call.1']
    #allocation6 [shape = 's32[2]{0}', space=sflag, size = 0x8, scoped, tag = 'scoped memory for tpu_custom_call.1']
    #allocation7 [shape = 'u8[16384]{0}', space=vmem, size = 0x4000, scoped, tag = 'input window, operand 1, single buffered']
    #allocation8 [shape = 's32[1]{0}', space=sflag, size = 0x4, scoped, tag = 'scoped memory for tpu_custom_call.1']
    #allocation9 [shape = 'u8[16384]{0}', space=vmem, size = 0x4000, scoped, tag = 'input window, operand 2, single buffered']
    #allocation10 [shape = 'u8[4096]{0}', space=vmem, size = 0x1000, scoped, tag = 'input window, operand 3, single buffered']
    #allocation11 [shape = 's32[1]{0}', space=sflag, size = 0x4, scoped, tag = 'scoped memory for tpu_custom_call.1']
    #allocation12 [shape = 'u8[32768]{0}', space=vmem, size = 0x8000, scoped, tag = 'output window, operand 0']
    %9 = vsyncpa [#allocation5], 0
    %s10 = scalar_lea.sflag [#allocation5], 1
    %11 = vsyncpa %s10, 0
    %12 = vsyncpa [#allocation8], 0
    %13 = vsyncpa [#allocation11], 0
    %14 = vsyncpa [#allocation6], 0
    %s15 = scalar_lea.sflag [#allocation6], 1
    %16 = vsyncpa %s15, 0
    loop: start=0, step=1, limit=6
    $region2: #{tpu_custom_call.1} parent=1 // loop_pre_header
      _
    $region3: #{tpu_custom_call.1} parent=1 // loop_header
      %s18 = sphi 0, %s22
      %p19 = scmp.ge.s32.totalorder %s18, 6
      %s25 = sphi 0, %s37
      %s26 = sphi 0, %s33
      %s27 = sphi 0, %s25
      %s28 = sphi 0, %s26
      %s29 = sphi 0, %s27
      %s30 = sphi 0, %s28
      %s40 = sphi 0, %s42
      %s43 = sphi 0, %s40
      %s44 = sphi 0, %s43
      %s60 = sphi 0, %s44
      %s64 = sphi 0, %s64
      %s66 = sphi 0, %s64
      %s67 = sphi 0, %s66
      %s81 = sphi 0, %s67
      %s85 = sphi 0, %s85
      %s87 = sphi 0, %s85
      %s88 = sphi 0, %s87
      %s102 = sphi 0, %s88
      %s106 = sphi 0, %s106
      %s108 = sphi 0, %s106
      %s109 = sphi 0, %s108
      %s123 = sphi 0, %s109
      %s131 = sphi 0, %s133
      %s134 = sphi 0, %s131
      %s135 = sphi 0, %s134
      %s151 = sphi 0, %s135
    $region4: #{tpu_custom_call.1} parent=1 // loop_header_branch
      %21 = sbr.rel (%p19) target = $region8
    $region5: #{tpu_custom_call.1} parent=1 // loop_body
      %s23 = ssub.s32 %s18, 1
      %s24 = ssub.s32 %s18, 2
      %s31 = sadd.s32 1, %s26
      %p32 = scmp.ge.s32.totalorder %s31, 2
      %s33 = scalar_select %p32, 0, %s31
      %s34 = sadd.s32 1, %s25
      %s35 = scalar_select %p32, %s34, %s25
      %p36 = scmp.ge.s32.totalorder %s35, 2
      %s37 = scalar_select %p36, 0, %s35
      %s38 = ssub.s32 %s25, %s37
      %p39 = scmp.eq.s32.totalorder %s38, 0
      %s41 = sadd.s32 %s40, 1
      %s42 = scalar_select %p39, %s40, %s41
      %p45 = pneg %p39
      %p46 = scmp.eq.s32.totalorder %s18, 3
      %p47 = por %p45, %p46
      %p48 = scmp.ne.s32.totalorder %s40, %s43
      %p49 = scmp.eq.s32.totalorder %s18, 0
      %p50 = por %p48, %p49
      %p51 = scmp.ne.s32.totalorder %s40, %s43
      %p52 = scmp.eq.s32.totalorder %s23, 3
      %p53 = por %p51, %p52
      %p54 = scmp.ne.s32.totalorder %s43, %s44
      %p55 = scmp.eq.s32.totalorder %s23, 0
      %p56 = por %p54, %p55
      %p57 = scmp.ne.s32.totalorder %s43, %s44
      %p58 = scmp.eq.s32.totalorder %s24, 3
      %p59 = por %p57, %p58
      %p61 = scmp.ne.s32.totalorder %s44, %s60
      %p62 = scmp.eq.s32.totalorder %s24, 0
      %p63 = por %p61, %p62
      %s65 = sadd.s32 %s64, 1
      %p68 = scmp.eq.s32.totalorder %s18, 3
      %p69 = scmp.ne.s32.totalorder %s64, %s66
      %p70 = scmp.eq.s32.totalorder %s18, 0
      %p71 = por %p69, %p70
      %p72 = scmp.ne.s32.totalorder %s64, %s66
      %p73 = scmp.eq.s32.totalorder %s23, 3
      %p74 = por %p72, %p73
      %p75 = scmp.ne.s32.totalorder %s66, %s67
      %p76 = scmp.eq.s32.totalorder %s23, 0
      %p77 = por %p75, %p76
      %p78 = scmp.ne.s32.totalorder %s66, %s67
      %p79 = scmp.eq.s32.totalorder %s24, 3
      %p80 = por %p78, %p79
      %p82 = scmp.ne.s32.totalorder %s67, %s81
      %p83 = scmp.eq.s32.totalorder %s24, 0
      %p84 = por %p82, %p83
      %s86 = sadd.s32 %s85, 1
      %p89 = scmp.eq.s32.totalorder %s18, 3
      %p90 = scmp.ne.s32.totalorder %s85, %s87
      %p91 = scmp.eq.s32.totalorder %s18, 0
      %p92 = por %p90, %p91
      %p93 = scmp.ne.s32.totalorder %s85, %s87
      %p94 = scmp.eq.s32.totalorder %s23, 3
      %p95 = por %p93, %p94
      %p96 = scmp.ne.s32.totalorder %s87, %s88
      %p97 = scmp.eq.s32.totalorder %s23, 0
      %p98 = por %p96, %p97
      %p99 = scmp.ne.s32.totalorder %s87, %s88
      %p100 = scmp.eq.s32.totalorder %s24, 3
      %p101 = por %p99, %p100
      %p103 = scmp.ne.s32.totalorder %s88, %s102
      %p104 = scmp.eq.s32.totalorder %s24, 0
      %p105 = por %p103, %p104
      %s107 = sadd.s32 %s106, 1
      %p110 = scmp.eq.s32.totalorder %s18, 3
      %p111 = scmp.ne.s32.totalorder %s106, %s108
      %p112 = scmp.eq.s32.totalorder %s18, 0
      %p113 = por %p111, %p112
      %p114 = scmp.ne.s32.totalorder %s106, %s108
      %p115 = scmp.eq.s32.totalorder %s23, 3
      %p116 = por %p114, %p115
      %p117 = scmp.ne.s32.totalorder %s108, %s109
      %p118 = scmp.eq.s32.totalorder %s23, 0
      %p119 = por %p117, %p118
      %p120 = scmp.ne.s32.totalorder %s108, %s109
      %p121 = scmp.eq.s32.totalorder %s24, 3
      %p122 = por %p120, %p121
      %p124 = scmp.ne.s32.totalorder %s109, %s123
      %p125 = scmp.eq.s32.totalorder %s24, 0
      %p126 = por %p124, %p125
      %s127 = ssub.s32 %s25, %s37
      %s128 = ssub.s32 %s26, %s33
      %s129 = sor.u32 %s127, %s128
      %p130 = scmp.eq.s32.totalorder %s129, 0
      %s132 = sadd.s32 %s131, 1
      %s133 = scalar_select %p130, %s131, %s132
      %p136 = pneg %p130
      %p137 = scmp.eq.s32.totalorder %s18, 3
      %p138 = por %p136, %p137
      %p139 = scmp.ne.s32.totalorder %s131, %s134
      %p140 = scmp.eq.s32.totalorder %s18, 0
      %p141 = por %p139, %p140
      %p142 = scmp.ne.s32.totalorder %s131, %s134
      %p143 = scmp.eq.s32.totalorder %s23, 3
      %p144 = por %p142, %p143
      %p145 = scmp.ne.s32.totalorder %s134, %s135
      %p146 = scmp.eq.s32.totalorder %s23, 0
      %p147 = por %p145, %p146
      %p148 = scmp.ne.s32.totalorder %s134, %s135
      %p149 = scmp.eq.s32.totalorder %s24, 3
      %p150 = por %p148, %p149
      %p152 = scmp.ne.s32.totalorder %s135, %s151
      %p153 = scmp.eq.s32.totalorder %s24, 0
      %p154 = por %p152, %p153
      %p155 = scmp.le.s32.totalorder 1, %s18
      %p156 = scmp.lt.s32.totalorder %s18, 5
      %p157 = pnand %p155, %p156
      %p158 = pneg %p157
      // Predicated region
      $region9: #{tpu_custom_call.1} parent=5 // pred_check
        _
      $region10: #{tpu_custom_call.1} parent=5 // pred_check_branch
        %160 = sbr.rel (%p157) target = $region12
      $region11: #{tpu_custom_call.1} parent=5 // pred_region
        %s161 = ssub.s32 %s18, 1
        // Predicated region
        $region13: #{tpu_custom_call.1} parent=11 // pred_check
          %p162 = pneg %p77
        $region14: #{tpu_custom_call.1} parent=11 // pred_check_branch
          %164 = sbr.rel (%p162) target = $region16
        $region15: #{tpu_custom_call.1} parent=11 // pred_region
          %s166 = ssub.s32 512, 512
          %167 = vsyncadd [#allocation8], %s166
          %s168 = sshll.u32 [#allocation7], 4
          %s169 = int_to_ptr.vmem [resolvable:$true] %s168
          %174 = dma.hbm_to_vmem [thread:$0]  %s1, 512, %s169, [#allocation8], 128, 128, 8
        $region16: #{tpu_custom_call.1} parent=11 // pred_fallthru
          _
        // Predicated region
        $region17: #{tpu_custom_call.1} parent=11 // pred_check
          %p175 = pneg %p98
        $region18: #{tpu_custom_call.1} parent=11 // pred_check_branch
          %177 = sbr.rel (%p175) target = $region20
        $region19: #{tpu_custom_call.1} parent=11 // pred_region
          %s179 = ssub.s32 512, 512
          %180 = vsyncadd [#allocation8], %s179
          %s181 = sshll.u32 [#allocation9], 4
          %s182 = int_to_ptr.vmem [resolvable:$true] %s181
          %187 = dma.hbm_to_vmem [thread:$0]  %s2, 512, %s182, [#allocation8], 128, 128, 8
        $region20: #{tpu_custom_call.1} parent=11 // pred_fallthru
          _
        // Predicated region
        $region21: #{tpu_custom_call.1} parent=11 // pred_check
          %p188 = pneg %p119
        $region22: #{tpu_custom_call.1} parent=11 // pred_check_branch
          %190 = sbr.rel (%p188) target = $region24
        $region23: #{tpu_custom_call.1} parent=11 // pred_region
          %s192 = ssub.s32 128, 128
          %193 = vsyncadd [#allocation11], %s192
          %s195 = sshll.u32 [#allocation10], 4
          %s196 = int_to_ptr.vmem [resolvable:$true] %s195
          %198 = dma.hbm_to_vmem [thread:$0]  %s3, 128, %s196, [#allocation11]
        $region24: #{tpu_custom_call.1} parent=11 // pred_fallthru
          _
      $region12: #{tpu_custom_call.1} parent=5 // pred_fallthru
        _
      %p199 = scmp.lt.s32.totalorder %s18, 4
      // Predicated region
      $region25: #{tpu_custom_call.1} parent=5 // pred_check
        %p200 = pneg %p199
      $region26: #{tpu_custom_call.1} parent=5 // pred_check_branch
        %202 = sbr.rel (%p200) target = $region28
      $region27: #{tpu_custom_call.1} parent=5 // pred_region
        // Predicated region
        $region29: #{tpu_custom_call.1} parent=27 // pred_check
          %p203 = pneg %p50
        $region30: #{tpu_custom_call.1} parent=27 // pred_check_branch
          %205 = sbr.rel (%p203) target = $region32
        $region31: #{tpu_custom_call.1} parent=27 // pred_region
          %s206 = sand.u32 %s40, 1
          %s207 = scalar_lea.sflag [#allocation5], %s206
          %s208 = sand.u32 %s40, 1
          %s209 = smul.addr %s208, 8
          %s210 = scalar_lea.vmem [#allocation4], %s209
          %s212 = ssub.s32 128, 128
          %213 = vsyncadd %s207, %s212
          %s214 = smul.addr %s25, 2
          %s215 = smul.addr %s214, 64
          %s216 = scalar_lea.hbm %s0, %s215
          %s218 = sshll.u32 %s210, 4
          %s219 = int_to_ptr.vmem [resolvable:$true] %s218
          %221 = dma.hbm_to_vmem [thread:$0]  %s216, 128, %s219, %s207
        $region32: #{tpu_custom_call.1} parent=27 // pred_fallthru
          _
      $region28: #{tpu_custom_call.1} parent=5 // pred_fallthru
        _
      %p222 = scmp.le.s32.totalorder 1, %s18
      %p223 = scmp.lt.s32.totalorder %s18, 5
      %p224 = pnand %p222, %p223
      %p225 = pneg %p224
      // Predicated region
      $region33: #{tpu_custom_call.1} parent=5 // pred_check
        _
      $region34: #{tpu_custom_call.1} parent=5 // pred_check_branch
        %227 = sbr.rel (%p224) target = $region36
      $region35: #{tpu_custom_call.1} parent=5 // pred_region
        %s228 = ssub.s32 %s18, 1
        %s229 = sand.u32 %s43, 1
        %s230 = scalar_lea.sflag [#allocation5], %s229
        %s231 = sand.u32 %s43, 1
        %s232 = smul.addr %s231, 8
        %s233 = scalar_lea.vmem [#allocation4], %s232
        // Predicated region
        $region37: #{tpu_custom_call.1} parent=35 // pred_check
          %p234 = pneg %p56
        $region38: #{tpu_custom_call.1} parent=35 // pred_check_branch
          %236 = sbr.rel (%p234) target = $region40
        $region39: #{tpu_custom_call.1} parent=35 // pred_region
          %237 = dma.done %s230, 128
        $region40: #{tpu_custom_call.1} parent=35 // pred_fallthru
          _
        // Predicated region
        $region41: #{tpu_custom_call.1} parent=35 // pred_check
          %p238 = pneg %p77
        $region42: #{tpu_custom_call.1} parent=35 // pred_check_branch
          %240 = sbr.rel (%p238) target = $region44
        $region43: #{tpu_custom_call.1} parent=35 // pred_region
          %241 = dma.done [#allocation8], 512
        $region44: #{tpu_custom_call.1} parent=35 // pred_fallthru
          _
        // Predicated region
        $region45: #{tpu_custom_call.1} parent=35 // pred_check
          %p242 = pneg %p98
        $region46: #{tpu_custom_call.1} parent=35 // pred_check_branch
          %244 = sbr.rel (%p242) target = $region48
        $region47: #{tpu_custom_call.1} parent=35 // pred_region
          %245 = dma.done [#allocation8], 512
        $region48: #{tpu_custom_call.1} parent=35 // pred_fallthru
          _
        // Predicated region
        $region49: #{tpu_custom_call.1} parent=35 // pred_check
          %p246 = pneg %p119
        $region50: #{tpu_custom_call.1} parent=35 // pred_check_branch
          %248 = sbr.rel (%p246) target = $region52
        $region51: #{tpu_custom_call.1} parent=35 // pred_region
          %249 = dma.done [#allocation11], 128
        $region52: #{tpu_custom_call.1} parent=35 // pred_fallthru
          _
        %s250 = sand.u32 %s43, 1
        %s251 = scalar_lea.sflag [#allocation5], %s250
        %s252 = sand.u32 %s43, 1
        %s253 = smul.addr %s252, 8
        %s254 = scalar_lea.vmem [#allocation4], %s253
        %p255 = pneg %p56
        %p256 = pneg %p53
        %p257 = pneg %p77
        %p258 = pneg %p74
        %p259 = pneg %p98
        %p260 = pneg %p95
        %p261 = pneg %p119
        %p262 = pneg %p116
        %p263 = pneg %p147
        %p264 = pneg %p144
        %s265 = sand.u32 %s134, 1
        %s266 = scalar_lea.sflag [#allocation6], %s265
        %s267 = sand.u32 %s134, 1
        %s268 = smul.addr %s267, 32
        %s269 = scalar_lea.vmem [#allocation12], %s268
        %270 = vst [vmem:[#allocation2] sm:$0x7] 0.0
        %271 = vst [vmem:[#allocation2 + $0xc] sm:$0x7] 0.0
        %v272 = vld [vmem:[%s233] sm:$0x77]
        %273 = vst [vmem:[#allocation2 + $0x4] sm:$0x77] %v272
        %s274 = smul.u32 %s28, 128
        %s275 = sshra.s32 %s274, 7
        %s276 = sand.u32 %s274, 127
        %s277 = smul.addr %s275, 4
        %s278 = scalar_lea.vmem [#allocation2], %s277
        %v279 = vld [vmem:[%s278] sm:$0x77]
        %v280 = vld [vmem:[%s278 + $0x8] sm:$0x7]
        %v281 = vld [vmem:[#allocation10] sm:$0x1]
        %v282 = vlaneseq
        %v283 = vshrl.u32 %v282, 7
        %v284 = vsub.s32 0, %v283
        %v285 = vrot.slane %v281, %v284
        %287 = vrot.lane.b32.xlu0 %v285, 94
        %v288 = vpop.permute.xlu0 %287
        %v289 = vrot.slane %v288, 4
        %vm290 = vcmask 769024
        %v291 = vsel %vm290, %v289, %v288
        %v293 = vmul.f32 %v279, %v291
        %v295 = vcombine.high %v293, %v293
        %296 = vrot.lane.b32.xlu0 %v293, 34
        %v297 = vpop.permute.xlu0 %296
        %298 = vrot.lane.b32.xlu0 %v295, 34
        %v299 = vpop.permute.xlu0 %298
        %vm300 = vcmask 277504
        %v301 = vsel %vm300, %v297, %v299
        %303 = vst [vmem:[#allocation3] sm:$0x7] %v301
        %v304 = vld [vmem:[#allocation10 + $0x1] sm:$0x1]
        %v305 = vlaneseq
        %v306 = vshrl.u32 %v305, 7
        %v307 = vsub.s32 0, %v306
        %v308 = vrot.slane %v304, %v307
        %310 = vrot.lane.b32.xlu0 %v308, 95
        %v311 = vpop.permute.xlu0 %310
        %v312 = vrot.slane %v311, 4
        %vm313 = vcmask 777216
        %v314 = vsel %vm313, %v312, %v311
        %v316 = vmul.f32 %v279, %v314
        %v318 = vcombine.high %v316, %v316
        %319 = vrot.lane.b32.xlu0 %v316, 33
        %v320 = vpop.permute.xlu0 %319
        %321 = vrot.lane.b32.xlu0 %v318, 33
        %v322 = vpop.permute.xlu0 %321
        %vm323 = vcmask 269312
        %v324 = vsel %vm323, %v320, %v322
        %326 = vst [vmem:[#allocation3 + $0x3] sm:$0x7] %v324
        %v327 = vld [vmem:[#allocation10 + $0x2] sm:$0x1]
        %v328 = vlaneseq
        %v329 = vshrl.u32 %v328, 7
        %v330 = vsub.s32 0, %v329
        %v331 = vrot.slane %v327, %v330
        %333 = vrot.lane.b32.xlu0 %v331, 96
        %v334 = vpop.permute.xlu0 %333
        %v335 = vrot.slane %v334, 4
        %vm336 = vcmask 785408
        %v337 = vsel %vm336, %v335, %v334
        %v339 = vmul.f32 %v279, %v337
        %v341 = vcombine.high %v339, %v339
        %342 = vrot.lane.b32.xlu0 %v339, 32
        %v343 = vpop.permute.xlu0 %342
        %344 = vrot.lane.b32.xlu0 %v341, 32
        %v345 = vpop.permute.xlu0 %344
        %vm346 = vcmask 261120
        %v347 = vsel %vm346, %v343, %v345
        %349 = vst [vmem:[#allocation3 + $0x6] sm:$0x7] %v347
        %v350 = vld [vmem:[#allocation10 + $0x3] sm:$0x1]
        %v351 = vlaneseq
        %v352 = vshrl.u32 %v351, 7
        %v353 = vsub.s32 0, %v352
        %v354 = vrot.slane %v350, %v353
        %356 = vrot.lane.b32.xlu0 %v354, 97
        %v357 = vpop.permute.xlu0 %356
        %v358 = vrot.slane %v357, 4
        %vm359 = vcmask 793600
        %v360 = vsel %vm359, %v358, %v357
        %v362 = vmul.f32 %v279, %v360
        %v364 = vcombine.high %v362, %v362
        %365 = vrot.lane.b32.xlu0 %v362, 31
        %v366 = vpop.permute.xlu0 %365
        %367 = vrot.lane.b32.xlu0 %v364, 31
        %v368 = vpop.permute.xlu0 %367
        %vm369 = vcmask 252928
        %v370 = vsel %vm369, %v366, %v368
        %372 = vst [vmem:[#allocation3 + $0x9] sm:$0x7] %v370
        %v373 = vld [vmem:[#allocation10 + $0x4] sm:$0x1]
        %v374 = vlaneseq
        %v375 = vshrl.u32 %v374, 7
        %v376 = vsub.s32 0, %v375
        %v377 = vrot.slane %v373, %v376
        %379 = vrot.lane.b32.xlu0 %v377, 98
        %v380 = vpop.permute.xlu0 %379
        %v381 = vrot.slane %v380, 4
        %vm382 = vcmask 801792
        %v383 = vsel %vm382, %v381, %v380
        %v385 = vmul.f32 %v279, %v383
        %v387 = vcombine.high %v385, %v385
        %388 = vrot.lane.b32.xlu0 %v385, 30
        %v389 = vpop.permute.xlu0 %388
        %390 = vrot.lane.b32.xlu0 %v387, 30
        %v391 = vpop.permute.xlu0 %390
        %vm392 = vcmask 244736
        %v393 = vsel %vm392, %v389, %v391
        %395 = vst [vmem:[#allocation3 + $0xc] sm:$0x7] %v393
        %v396 = vld [vmem:[#allocation10] sm:$0x1]
        %v397 = vlaneseq
        %v398 = vshrl.u32 %v397, 7
        %v399 = vsub.s32 0, %v398
        %v400 = vrot.slane %v396, %v399
        %402 = vrot.lane.b32.xlu0 %v400, 110
        %v403 = vpop.permute.xlu0 %402
        %v404 = vrot.slane %v403, 4
        %vm405 = vcmask 900096
        %v406 = vsel %vm405, %v404, %v403
        %v408 = vmul.f32 %v279, %v406
        %v410 = vcombine.high %v408, %v408
        %411 = vrot.lane.b32.xlu0 %v408, 18
        %v412 = vpop.permute.xlu0 %411
        %413 = vrot.lane.b32.xlu0 %v410, 18
        %v414 = vpop.permute.xlu0 %413
        %vm415 = vcmask 146432
        %v416 = vsel %vm415, %v412, %v414
        %418 = vst [vmem:[#allocation3 + $0xf] sm:$0x7] %v416
        %v419 = vld [vmem:[#allocation10 + $0x1] sm:$0x1]
        %v420 = vlaneseq
        %v421 = vshrl.u32 %v420, 7
        %v422 = vsub.s32 0, %v421
        %v423 = vrot.slane %v419, %v422
        %425 = vrot.lane.b32.xlu0 %v423, 111
        %v426 = vpop.permute.xlu0 %425
        %v427 = vrot.slane %v426, 4
        %vm428 = vcmask 908288
        %v429 = vsel %vm428, %v427, %v426
        %v431 = vmul.f32 %v279, %v429
        %v433 = vcombine.high %v431, %v431
        %434 = vrot.lane.b32.xlu0 %v431, 17
        %v435 = vpop.permute.xlu0 %434
        %436 = vrot.lane.b32.xlu0 %v433, 17
        %v437 = vpop.permute.xlu0 %436
        %vm438 = vcmask 138240
        %v439 = vsel %vm438, %v435, %v437
        %441 = vst [vmem:[#allocation3 + $0x12] sm:$0x7] %v439
        %v442 = vld [vmem:[#allocation10 + $0x2] sm:$0x1]
        %v443 = vlaneseq
        %v444 = vshrl.u32 %v443, 7
        %v445 = vsub.s32 0, %v444
        %v446 = vrot.slane %v442, %v445
        %448 = vrot.lane.b32.xlu0 %v446, 112
        %v449 = vpop.permute.xlu0 %448
        %v450 = vrot.slane %v449, 4
        %vm451 = vcmask 916480
        %v452 = vsel %vm451, %v450, %v449
        %v454 = vmul.f32 %v279, %v452
        %v456 = vcombine.high %v454, %v454
        %457 = vrot.lane.b32.xlu0 %v454, 16
        %v458 = vpop.permute.xlu0 %457
        %459 = vrot.lane.b32.xlu0 %v456, 16
        %v460 = vpop.permute.xlu0 %459
        %vm461 = vcmask 130048
        %v462 = vsel %vm461, %v458, %v460
        %464 = vst [vmem:[#allocation3 + $0x15] sm:$0x7] %v462
        %v465 = vld [vmem:[#allocation10 + $0x3] sm:$0x1]
        %v466 = vlaneseq
        %v467 = vshrl.u32 %v466, 7
        %v468 = vsub.s32 0, %v467
        %v469 = vrot.slane %v465, %v468
        %471 = vrot.lane.b32.xlu0 %v469, 113
        %v472 = vpop.permute.xlu0 %471
        %v473 = vrot.slane %v472, 4
        %vm474 = vcmask 924672
        %v475 = vsel %vm474, %v473, %v472
        %v477 = vmul.f32 %v279, %v475
        %v479 = vcombine.high %v477, %v477
        %480 = vrot.lane.b32.xlu0 %v477, 15
        %v481 = vpop.permute.xlu0 %480
        %482 = vrot.lane.b32.xlu0 %v479, 15
        %v483 = vpop.permute.xlu0 %482
        %vm484 = vcmask 121856
        %v485 = vsel %vm484, %v481, %v483
        %487 = vst [vmem:[#allocation3 + $0x18] sm:$0x7] %v485
        %v488 = vld [vmem:[#allocation10 + $0x4] sm:$0x1]
        %v489 = vlaneseq
        %v490 = vshrl.u32 %v489, 7
        %v491 = vsub.s32 0, %v490
        %v492 = vrot.slane %v488, %v491
        %494 = vrot.lane.b32.xlu0 %v492, 114
        %v495 = vpop.permute.xlu0 %494
        %v496 = vrot.slane %v495, 4
        %vm497 = vcmask 932864
        %v498 = vsel %vm497, %v496, %v495
        %v500 = vmul.f32 %v279, %v498
        %v502 = vcombine.high %v500, %v500
        %503 = vrot.lane.b32.xlu0 %v500, 14
        %v504 = vpop.permute.xlu0 %503
        %505 = vrot.lane.b32.xlu0 %v502, 14
        %v506 = vpop.permute.xlu0 %505
        %vm507 = vcmask 113664
        %v508 = vsel %vm507, %v504, %v506
        %510 = vst [vmem:[#allocation3 + $0x1b] sm:$0x7] %v508
        %v511 = vld [vmem:[#allocation10] sm:$0x1]
        %v512 = vlaneseq
        %v513 = vshrl.u32 %v512, 7
        %v514 = vsub.s32 0, %v513
        %v515 = vrot.slane %v511, %v514
        %517 = vrot.lane.b32.xlu0 %v515, 126
        %v518 = vpop.permute.xlu0 %517
        %v519 = vrot.slane %v518, 4
        %vm520 = vcmask 1031168
        %v521 = vsel %vm520, %v519, %v518
        %v523 = vmul.f32 %v279, %v521
        %v525 = vcombine.high %v523, %v523
        %526 = vrot.lane.b32.xlu0 %v523, 2
        %v527 = vpop.permute.xlu0 %526
        %528 = vrot.lane.b32.xlu0 %v525, 2
        %v529 = vpop.permute.xlu0 %528
        %vm530 = vcmask 15360
        %v531 = vsel %vm530, %v527, %v529
        %533 = vst [vmem:[#allocation3 + $0x1e] sm:$0x7] %v531
        %v534 = vld [vmem:[#allocation10 + $0x1] sm:$0x1]
        %v535 = vlaneseq
        %v536 = vshrl.u32 %v535, 7
        %v537 = vsub.s32 0, %v536
        %v538 = vrot.slane %v534, %v537
        %540 = vrot.lane.b32.xlu0 %v538, 127
        %v541 = vpop.permute.xlu0 %540
        %v542 = vrot.slane %v541, 4
        %vm543 = vcmask 1039360
        %v544 = vsel %vm543, %v542, %v541
        %v546 = vmul.f32 %v279, %v544
        %v548 = vcombine.high %v546, %v546
        %549 = vrot.lane.b32.xlu0 %v546, 1
        %v550 = vpop.permute.xlu0 %549
        %551 = vrot.lane.b32.xlu0 %v548, 1
        %v552 = vpop.permute.xlu0 %551
        %vm553 = vcmask 7168
        %v554 = vsel %vm553, %v550, %v552
        %556 = vst [vmem:[#allocation3 + $0x21] sm:$0x7] %v554
        %v557 = vld [vmem:[#allocation10 + $0x2] sm:$0x1]
        %v558 = vlaneseq
        %v559 = vshrl.u32 %v558, 7
        %v560 = vsub.s32 0, %v559
        %v561 = vrot.slane %v557, %v560
        %v563 = vrot.slane %v279, 4
        %v565 = vmul.f32 %v563, %v561
        %566 = vst [vmem:[#allocation3 + $0x24] sm:$0x7] %v565
        %v567 = vld [vmem:[#allocation10 + $0x3] sm:$0x1]
        %v568 = vlaneseq
        %v569 = vshrl.u32 %v568, 7
        %v570 = vsub.s32 0, %v569
        %v571 = vrot.slane %v567, %v570
        %573 = vrot.lane.b32.xlu0 %v279, 127
        %v574 = vpop.permute.xlu0 %573
        %575 = vrot.lane.b32.xlu0 %v280, 127
        %v576 = vpop.permute.xlu0 %575
        %v577 = vrot.slane %v574, 4
        %v578 = vsel %vm543, %v577, %v576
        %v580 = vmul.f32 %v578, %v571
        %581 = vst [vmem:[#allocation3 + $0x27] sm:$0x7] %v580
        %v582 = vld [vmem:[#allocation10 + $0x4] sm:$0x1]
        %v583 = vlaneseq
        %v584 = vshrl.u32 %v583, 7
        %v585 = vsub.s32 0, %v584
        %v586 = vrot.slane %v582, %v585
        %587 = vrot.lane.b32.xlu0 %v279, 126
        %v588 = vpop.permute.xlu0 %587
        %589 = vrot.lane.b32.xlu0 %v280, 126
        %v590 = vpop.permute.xlu0 %589
        %v591 = vrot.slane %v588, 4
        %v592 = vsel %vm520, %v591, %v590
        %v594 = vmul.f32 %v592, %v586
        %595 = vst [vmem:[#allocation3 + $0x2a] sm:$0x7] %v594
        %v596 = vld [vmem:[#allocation10] sm:$0x1]
        %v597 = vlaneseq
        %v598 = vshrl.u32 %v597, 7
        %v599 = vsub.s32 0, %v598
        %v600 = vrot.slane %v596, %v599
        %601 = vrot.lane.b32.xlu0 %v279, 114
        %v602 = vpop.permute.xlu0 %601
        %603 = vrot.lane.b32.xlu0 %v280, 114
        %v604 = vpop.permute.xlu0 %603
        %v605 = vrot.slane %v602, 4
        %v606 = vsel %vm497, %v605, %v604
        %v608 = vmul.f32 %v606, %v600
        %609 = vst [vmem:[#allocation3 + $0x2d] sm:$0x7] %v608
        %v610 = vld [vmem:[#allocation10 + $0x1] sm:$0x1]
        %v611 = vlaneseq
        %v612 = vshrl.u32 %v611, 7
        %v613 = vsub.s32 0, %v612
        %v614 = vrot.slane %v610, %v613
        %615 = vrot.lane.b32.xlu0 %v279, 113
        %v616 = vpop.permute.xlu0 %615
        %617 = vrot.lane.b32.xlu0 %v280, 113
        %v618 = vpop.permute.xlu0 %617
        %v619 = vrot.slane %v616, 4
        %v620 = vsel %vm474, %v619, %v618
        %v622 = vmul.f32 %v620, %v614
        %623 = vst [vmem:[#allocation3 + $0x30] sm:$0x7] %v622
        %v624 = vld [vmem:[#allocation10 + $0x2] sm:$0x1]
        %v625 = vlaneseq
        %v626 = vshrl.u32 %v625, 7
        %v627 = vsub.s32 0, %v626
        %v628 = vrot.slane %v624, %v627
        %629 = vrot.lane.b32.xlu0 %v279, 112
        %v630 = vpop.permute.xlu0 %629
        %631 = vrot.lane.b32.xlu0 %v280, 112
        %v632 = vpop.permute.xlu0 %631
        %v633 = vrot.slane %v630, 4
        %v634 = vsel %vm451, %v633, %v632
        %v636 = vmul.f32 %v634, %v628
        %637 = vst [vmem:[#allocation3 + $0x33] sm:$0x7] %v636
        %v638 = vld [vmem:[#allocation10 + $0x3] sm:$0x1]
        %v639 = vlaneseq
        %v640 = vshrl.u32 %v639, 7
        %v641 = vsub.s32 0, %v640
        %v642 = vrot.slane %v638, %v641
        %643 = vrot.lane.b32.xlu0 %v279, 111
        %v644 = vpop.permute.xlu0 %643
        %645 = vrot.lane.b32.xlu0 %v280, 111
        %v646 = vpop.permute.xlu0 %645
        %v647 = vrot.slane %v644, 4
        %v648 = vsel %vm428, %v647, %v646
        %v650 = vmul.f32 %v648, %v642
        %651 = vst [vmem:[#allocation3 + $0x36] sm:$0x7] %v650
        %v652 = vld [vmem:[#allocation10 + $0x4] sm:$0x1]
        %v653 = vlaneseq
        %v654 = vshrl.u32 %v653, 7
        %v655 = vsub.s32 0, %v654
        %v656 = vrot.slane %v652, %v655
        %657 = vrot.lane.b32.xlu0 %v279, 110
        %v658 = vpop.permute.xlu0 %657
        %659 = vrot.lane.b32.xlu0 %v280, 110
        %v660 = vpop.permute.xlu0 %659
        %v661 = vrot.slane %v658, 4
        %v662 = vsel %vm405, %v661, %v660
        %v664 = vmul.f32 %v662, %v656
        %665 = vst [vmem:[#allocation3 + $0x39] sm:$0x7] %v664
        %v666 = vld [vmem:[#allocation10] sm:$0x1]
        %v667 = vlaneseq
        %v668 = vshrl.u32 %v667, 7
        %v669 = vsub.s32 0, %v668
        %v670 = vrot.slane %v666, %v669
        %671 = vrot.lane.b32.xlu0 %v279, 98
        %v672 = vpop.permute.xlu0 %671
        %673 = vrot.lane.b32.xlu0 %v280, 98
        %v674 = vpop.permute.xlu0 %673
        %v675 = vrot.slane %v672, 4
        %v676 = vsel %vm382, %v675, %v674
        %v678 = vmul.f32 %v676, %v670
        %679 = vst [vmem:[#allocation3 + $0x3c] sm:$0x7] %v678
        %v680 = vld [vmem:[#allocation10 + $0x1] sm:$0x1]
        %v681 = vlaneseq
        %v682 = vshrl.u32 %v681, 7
        %v683 = vsub.s32 0, %v682
        %v684 = vrot.slane %v680, %v683
        %685 = vrot.lane.b32.xlu0 %v279, 97
        %v686 = vpop.permute.xlu0 %685
        %687 = vrot.lane.b32.xlu0 %v280, 97
        %v688 = vpop.permute.xlu0 %687
        %v689 = vrot.slane %v686, 4
        %v690 = vsel %vm359, %v689, %v688
        %v692 = vmul.f32 %v690, %v684
        %693 = vst [vmem:[#allocation3 + $0x3f] sm:$0x7] %v692
        %v694 = vld [vmem:[#allocation10 + $0x2] sm:$0x1]
        %v695 = vlaneseq
        %v696 = vshrl.u32 %v695, 7
        %v697 = vsub.s32 0, %v696
        %v698 = vrot.slane %v694, %v697
        %699 = vrot.lane.b32.xlu0 %v279, 96
        %v700 = vpop.permute.xlu0 %699
        %701 = vrot.lane.b32.xlu0 %v280, 96
        %v702 = vpop.permute.xlu0 %701
        %v703 = vrot.slane %v700, 4
        %v704 = vsel %vm336, %v703, %v702
        %v706 = vmul.f32 %v704, %v698
        %707 = vst [vmem:[#allocation3 + $0x42] sm:$0x7] %v706
        %v708 = vld [vmem:[#allocation10 + $0x3] sm:$0x1]
        %v709 = vlaneseq
        %v710 = vshrl.u32 %v709, 7
        %v711 = vsub.s32 0, %v710
        %v712 = vrot.slane %v708, %v711
        %713 = vrot.lane.b32.xlu0 %v279, 95
        %v714 = vpop.permute.xlu0 %713
        %715 = vrot.lane.b32.xlu0 %v280, 95
        %v716 = vpop.permute.xlu0 %715
        %v717 = vrot.slane %v714, 4
        %v718 = vsel %vm313, %v717, %v716
        %v720 = vmul.f32 %v718, %v712
        %721 = vst [vmem:[#allocation3 + $0x45] sm:$0x7] %v720
        %v722 = vld [vmem:[#allocation10 + $0x4] sm:$0x1]
        %v723 = vlaneseq
        %v724 = vshrl.u32 %v723, 7
        %v725 = vsub.s32 0, %v724
        %v726 = vrot.slane %v722, %v725
        %727 = vrot.lane.b32.xlu0 %v279, 94
        %v728 = vpop.permute.xlu0 %727
        %729 = vrot.lane.b32.xlu0 %v280, 94
        %v730 = vpop.permute.xlu0 %729
        %v731 = vrot.slane %v728, 4
        %v732 = vsel %vm290, %v731, %v730
        %v734 = vmul.f32 %v732, %v726
        %735 = vst [vmem:[#allocation3 + $0x48] sm:$0x7] %v734
        %v736 = vld [vmem:[#allocation7] sm:$0xff]
        %v737 = vld [vmem:[#allocation7 + $0x8] sm:$0xff]
        %v738 = vld [vmem:[#allocation7 + $0x10] sm:$0xff]
        %v739 = vld [vmem:[#allocation7 + $0x18] sm:$0xff]
        %v740 = vld [vmem:[#allocation3] sm:$0xff]
        %v741 = vld [vmem:[#allocation3 + $0x8] sm:$0xff]
        %v742 = vld [vmem:[#allocation3 + $0x10] sm:$0xff]
        %v743 = vld [vmem:[#allocation3 + $0x18] sm:$0xff]
        %v744 = vld [vmem:[#allocation3 + $0x20] sm:$0xff]
        %v745 = vld [vmem:[#allocation3 + $0x28] sm:$0xff]
        %v746 = vld [vmem:[#allocation3 + $0x30] sm:$0xff]
        %v747 = vld [vmem:[#allocation3 + $0x38] sm:$0xff]
        %v748 = vld [vmem:[#allocation3 + $0x40] sm:$0xff]
        %v749 = vld [vmem:[#allocation3 + $0x48] sm:$0x7]
        %v750 = vld [vmem:[#allocation9] sm:$0xff]
        %v751 = vld [vmem:[#allocation9 + $0x8] sm:$0xff]
        %v752 = vld [vmem:[#allocation9 + $0x10] sm:$0xff]
        %v753 = vld [vmem:[#allocation9 + $0x18] sm:$0xff]
        %755 = vset.pattern.permute.xlu0 0
        %756 = vperm.xlu0 %755, %v750
        %v757 = vpop.permute.xlu0 %756
        %760 = vset.pattern.permute.xlu0 0
        %761 = vperm.xlu0 %760, %v751
        %v762 = vpop.permute.xlu0 %761
        %765 = vset.pattern.permute.xlu0 0
        %766 = vperm.xlu0 %765, %v752
        %v767 = vpop.permute.xlu0 %766
        %770 = vset.pattern.permute.xlu0 0
        %771 = vperm.xlu0 %770, %v753
        %v772 = vpop.permute.xlu0 %771
        %vm774 = vcmask 613376
        %v776 = vsel %vm774, %v736, 0
        %v779 = vsel %vm774, %v737, 0
        %v782 = vsel %vm774, %v738, 0
        %v785 = vsel %vm774, %v739, 0
        %vm787 = vcmask 1042432
        %v789 = vsel %vm787, %v749, 0
        %791 = vmatprep.subr.mxu0 0.0
        %792 = vmatpush1.msra.mxu0 %v740
        %793 = vmatprep.subr.mxu0 0.0
        %794 = vmatpush1.msra.mxu0 %v741
        %795 = vmatprep.subr.mxu0 0.0
        %796 = vmatpush1.msra.mxu0 %v742
        %797 = vmatprep.subr.mxu0 0.0
        %798 = vmatpush1.msra.mxu0 %v743
        %799 = vmatprep.subr.mxu0 0.0
        %800 = vmatpush1.msra.mxu0 %v744
        %801 = vmatprep.subr.mxu0 0.0
        %802 = vmatpush1.msra.mxu0 %v745
        %803 = vmatprep.subr.mxu0 0.0
        %804 = vmatpush1.msra.mxu0 %v746
        %805 = vmatprep.subr.mxu0 0.0
        %806 = vmatpush1.msra.mxu0 %v747
        %807 = vmatprep.subr.mxu0 0.0
        %808 = vmatpush1.msra.mxu0 %v748
        %809 = vmatprep.subr.mxu0 0.0
        %810 = vmatpush1.msra.mxu0 %v789
        %811 = vmatprep.subr.mxu0 0.0
        %812 = vmatpush1.msra.mxu0 0.0
        %813 = vmatprep.subr.mxu0 0.0
        %814 = vmatpush1.msra.mxu0 0.0
        %815 = vmatprep.subr.mxu0 0.0
        %816 = vmatpush1.msra.mxu0 0.0
        %817 = vmatprep.subr.mxu0 0.0
        %818 = vmatpush1.msra.mxu0 0.0
        %819 = vmatprep.subr.mxu0 0.0
        %820 = vmatpush1.msra.mxu0 0.0
        %821 = vmatprep.subr.mxu0 0.0
        %822 = vmatpush1.msra.mxu0 0.0
        %823 = vmatprep.subr.mxu0 0.0
        %824 = vmatpush1.msra.mxu0 0.0
        %825 = vmatprep.subr.mxu0 0.0
        %826 = vmatpush1.msra.mxu0 0.0
        %827 = vmatprep.subr.mxu0 0.0
        %828 = vmatpush1.msra.mxu0 0.0
        %829 = vmatprep.subr.mxu0 0.0
        %830 = vmatpush1.msra.mxu0 0.0
        %831 = vmatprep.subr.mxu0 0.0
        %832 = vmatpush1.msra.mxu0 0.0
        %833 = vmatprep.subr.mxu0 0.0
        %834 = vmatpush1.msra.mxu0 0.0
        %835 = vmatprep.subr.mxu0 0.0
        %836 = vmatpush1.msra.mxu0 0.0
        %837 = vmatprep.subr.mxu0 0.0
        %838 = vmatpush1.msra.mxu0 0.0
        %839 = vmatprep.subr.mxu0 0.0
        %840 = vmatpush1.msra.mxu0 0.0
        %841 = vmatprep.subr.mxu0 0.0
        %842 = vmatpush1.msra.mxu0 0.0
        %843 = vmatprep.subr.mxu0 0.0
        %844 = vmatpush1.msra.mxu0 0.0
        %845 = vmatprep.subr.mxu0 0.0
        %846 = vmatpush1.msra.mxu0 0.0
        %847 = vmatprep.subr.mxu0 0.0
        %848 = vmatpush1.msra.mxu0 0.0
        %849 = vmatprep.subr.mxu0 0.0
        %850 = vmatpush1.msra.mxu0 0.0
        %851 = vmatprep.subr.mxu0 0.0
        %852 = vmatpush1.msra.mxu0 0.0
        %853 = vmatprep.subr.mxu0 0.0
        %854 = vmatpush1.msra.mxu0 0.0
        %855 = vmatprep.mubr.f32.mxu0 0.0
        %856 = vmatmul.mubr.f32.gmra.mrb[0].mxu0 %v776
        %v857 = vpop.f32.mrb[0].mxu0
        %v858 = vadd.f32 %v757, %v857
        %v859 = vpop.f32.mrb[0].mxu0
        %860 = vmatprep.mubr.f32.mxu0 0.0
        %861 = vmatmul.mubr.f32.gmra.mrb[0].mxu0 %v779
        %v862 = vpop.f32.mrb[0].mxu0
        %v863 = vadd.f32 %v762, %v862
        %v864 = vpop.f32.mrb[0].mxu0
        %865 = vmatprep.mubr.f32.mxu0 0.0
        %866 = vmatmul.mubr.f32.gmra.mrb[0].mxu0 %v782
        %v867 = vpop.f32.mrb[0].mxu0
        %v868 = vadd.f32 %v767, %v867
        %v869 = vpop.f32.mrb[0].mxu0
        %870 = vmatprep.mubr.f32.mxu0 0.0
        %871 = vmatmul.mubr.f32.gmra.mrb[0].mxu0 %v785
        %v872 = vpop.f32.mrb[0].mxu0
        %v873 = vadd.f32 %v772, %v872
        %v874 = vpop.f32.mrb[0].mxu0
        %875 = vdwg.mxu0
        %876 = vst [vmem:[%s269] sm:$0xff] %v858
        %877 = vst [vmem:[%s269 + $0x8] sm:$0xff] %v863
        %878 = vst [vmem:[%s269 + $0x10] sm:$0xff] %v868
        %879 = vst [vmem:[%s269 + $0x18] sm:$0x3f] %v873
        %s880 = sand.u32 %s134, 1
        %s881 = scalar_lea.sflag [#allocation6], %s880
        %s882 = sand.u32 %s134, 1
        %s883 = smul.addr %s882, 32
        %s884 = scalar_lea.vmem [#allocation12], %s883
        // Predicated region
        $region53: #{tpu_custom_call.1} parent=35 // pred_check
          %p885 = pneg %p144
        $region54: #{tpu_custom_call.1} parent=35 // pred_check_branch
          %887 = sbr.rel (%p885) target = $region56
        $region55: #{tpu_custom_call.1} parent=35 // pred_region
          %s889 = ssub.s32 512, 512
          %890 = vsyncadd %s881, %s889
          %s891 = smul.addr %s27, 8
          %s892 = sadd.s32 %s28, %s891
          %s893 = smul.addr %s892, 128
          %s894 = scalar_lea.hbm %s4, %s893
          %s895 = sshll.u32 %s884, 4
          %s896 = int_to_ptr.vmem [resolvable:$true] %s895
          %901 = dma.vmem_to_hbm [thread:$0]  %s896, 512, %s894, %s881, 128, 256, 8
        $region56: #{tpu_custom_call.1} parent=35 // pred_fallthru
          _
      $region36: #{tpu_custom_call.1} parent=5 // pred_fallthru
        _
      %p902 = scmp.le.s32.totalorder 2, %s18
      // Predicated region
      $region57: #{tpu_custom_call.1} parent=5 // pred_check
        %p903 = pneg %p902
      $region58: #{tpu_custom_call.1} parent=5 // pred_check_branch
        %905 = sbr.rel (%p903) target = $region60
      $region59: #{tpu_custom_call.1} parent=5 // pred_region
        %s906 = ssub.s32 %s18, 2
        // Predicated region
        $region61: #{tpu_custom_call.1} parent=59 // pred_check
          %p907 = pneg %p150
        $region62: #{tpu_custom_call.1} parent=59 // pred_check_branch
          %909 = sbr.rel (%p907) target = $region64
        $region63: #{tpu_custom_call.1} parent=59 // pred_region
          %s910 = sand.u32 %s135, 1
          %s911 = scalar_lea.sflag [#allocation6], %s910
          %s912 = sand.u32 %s135, 1
          %s913 = smul.addr %s912, 32
          %s914 = scalar_lea.vmem [#allocation12], %s913
          %915 = dma.done %s911, 512
        $region64: #{tpu_custom_call.1} parent=59 // pred_fallthru
          _
      $region60: #{tpu_custom_call.1} parent=5 // pred_fallthru
        _
    $region6: #{tpu_custom_call.1} parent=1 // loop_footer
      %s22 = sadd.s32 1, %s18
    $region7: #{tpu_custom_call.1} parent=1 // loop_footer_branch
      %17 = sbr.rel target = $region3
    $region8: #{tpu_custom_call.1} parent=1 // loop_exit
      _
    %916 = vsyncpa [#allocation5], 1
    %s917 = scalar_lea.sflag [#allocation5], 1
    %918 = vsyncpa %s917, 1
    %919 = vsyncpa [#allocation8], 1
    %920 = vsyncpa [#allocation11], 1
    %921 = vsyncpa [#allocation6], 1
    %s922 = scalar_lea.sflag [#allocation6], 1
    %923 = vsyncpa %s922, 1

</llo_original>
